<compile_context>
chip_gen: v6e
topology: v6e:2x2x1
jax: 0.10.0
libtpu: 0.0.40
codegen_flags: <defaults>
</compile_context>

<pallas_src>
import jax
import jax.numpy as jnp
import numpy as np
from jax.experimental import pallas as pl
from jax.experimental.pallas import tpu as pltpu


_TILE_M = 256                       # dst-row slab
_TILE_K = 256                       # src-node (reduction) slab
_VMEM_LIMIT = 32 * 1024 * 1024      # >= actual need (<4 MiB); safe on v5e/v6e/v7x


def _round_up(x, m):
    return (x + m - 1) // m * m


# ----------------------- Kernel 1: item-feature MLP ------------------------ #
def mlp_kernel(feat_ref, w1_ref, b1_ref, w2_ref, b2_ref, out_ref):
    h = jnp.dot(feat_ref[...], w1_ref[...],
                preferred_element_type=jnp.float32) + b1_ref[...]
    h = jnp.where(h > 0, h, 0.01 * h)                 # F.leaky_relu (slope 0.01)
    out_ref[...] = jnp.dot(h, w2_ref[...],
                           preferred_element_type=jnp.float32) + b2_ref[...]


# ----------------------- Kernel 2: row-wise L2 normalize ------------------- #
def normalize_kernel(x_ref, out_ref):
    x = x_ref[...]
    sumsq = jnp.sum(x * x, axis=-1, keepdims=True)
    # F.normalize: x / max(||x||, 1e-12)  ==  x * rsqrt(max(sumsq, 1e-24))
    out_ref[...] = x * jax.lax.rsqrt(jnp.maximum(sumsq, 1e-24))


# ------------------ Kernel 3: propagation pass 1 (h0 = A @ x) -------------- #
def prop_kernel(adj_ref, x_ref, h_ref, acc_ref):
    k = pl.program_id(1)

    @pl.when(k == 0)
    def _():
        acc_ref[...] = jnp.zeros_like(acc_ref)

    acc_ref[...] += jnp.dot(adj_ref[...].astype(jnp.float32), x_ref[...],
                            preferred_element_type=jnp.float32)

    @pl.when(k == pl.num_programs(1) - 1)
    def _():
        h_ref[...] = acc_ref[...]


# ---- Kernel 4: propagation pass 2 + residual (xhat = x + h0 + A @ h0) ----- #
def prop_combine_kernel(adj_ref, h0k_ref, x_ref, h0i_ref, xhat_ref, acc_ref):
    k = pl.program_id(1)

    @pl.when(k == 0)
    def _():
        acc_ref[...] = jnp.zeros_like(acc_ref)

    acc_ref[...] += jnp.dot(adj_ref[...].astype(jnp.float32), h0k_ref[...],
                            preferred_element_type=jnp.float32)

    @pl.when(k == pl.num_programs(1) - 1)
    def _():
        xhat_ref[...] = x_ref[...] + h0i_ref[...] + acc_ref[...]


# ------------------------------ wrapper ------------------------------------ #
def gcn_forward(preference, features, w1, b1, w2, b2, adj,
                *, tile_m=_TILE_M, tile_k=_TILE_K):
    num_user, dim_latent = preference.shape
    num_item, dim_feat = features.shape
    hid = w1.shape[1]
    n = num_user + num_item
    f32 = jnp.float32

    d_pad = _round_up(dim_latent, 128)
    f_pad = _round_up(dim_feat, 128)
    h_pad = _round_up(hid, 128)
    n_pad = _round_up(n, int(np.lcm(tile_m, tile_k)))
    i_pad = _round_up(num_item, tile_m)

    # ---- zero-pad weights / activations to lane-dense shapes -------------- #
    feat_p = jnp.zeros((i_pad, f_pad), f32).at[:num_item, :dim_feat].set(features)
    w1_p = jnp.zeros((f_pad, h_pad), f32).at[:dim_feat, :hid].set(w1)
    b1_p = jnp.zeros((1, h_pad), f32).at[:, :hid].set(b1.reshape(1, hid))
    w2_p = jnp.zeros((h_pad, d_pad), f32).at[:hid, :dim_latent].set(w2)
    b2_p = jnp.zeros((1, d_pad), f32).at[:, :dim_latent].set(b2.reshape(1, dim_latent))

    # ---- Kernel 1: temp = MLP_1(leaky_relu(MLP(features))) ---------------- #
    temp = pl.pallas_call(
        mlp_kernel,
        out_shape=jax.ShapeDtypeStruct((i_pad, d_pad), f32),
        grid=(i_pad // tile_m,),
        in_specs=[
            pl.BlockSpec((tile_m, f_pad), lambda i: (i, 0)),
            pl.BlockSpec((f_pad, h_pad), lambda i: (0, 0)),
            pl.BlockSpec((1, h_pad), lambda i: (0, 0)),
            pl.BlockSpec((h_pad, d_pad), lambda i: (0, 0)),
            pl.BlockSpec((1, d_pad), lambda i: (0, 0)),
        ],
        out_specs=pl.BlockSpec((tile_m, d_pad), lambda i: (i, 0)),
        compiler_params=pltpu.CompilerParams(
            dimension_semantics=("parallel",),
            vmem_limit_bytes=_VMEM_LIMIT),
    )(feat_p, w1_p, b1_p, w2_p, b2_p)

    # ---- x = F.normalize(cat([preference, temp], dim=0)) ------------------ #
    # Concat is layout plumbing done in HBM by XLA; padded rows stay zero.
    pref_p = jnp.zeros((num_user, d_pad), f32).at[:, :dim_latent].set(preference)
    x_cat = jnp.zeros((n_pad, d_pad), f32)
    x_cat = x_cat.at[:num_user].set(pref_p)
    x_cat = x_cat.at[num_user:n].set(temp[:num_item])

    x = pl.pallas_call(
        normalize_kernel,
        out_shape=jax.ShapeDtypeStruct((n_pad, d_pad), f32),
        grid=(n_pad // tile_m,),
        in_specs=[pl.BlockSpec((tile_m, d_pad), lambda i: (i, 0))],
        out_specs=pl.BlockSpec((tile_m, d_pad), lambda i: (i, 0)),
        compiler_params=pltpu.CompilerParams(
            dimension_semantics=("parallel",),
            vmem_limit_bytes=_VMEM_LIMIT),
    )(x_cat)

    # ---- adjacency: pad + bf16 stream dtype (f32 accumulate in-kernel) ---- #
    adj_p = (jnp.zeros((n_pad, n_pad), jnp.bfloat16)
             .at[:n, :n].set(adj.astype(jnp.bfloat16)))

    grid_prop = (n_pad // tile_m, n_pad // tile_k)
    prop_params = pltpu.CompilerParams(
        dimension_semantics=("parallel", "arbitrary"),
        vmem_limit_bytes=_VMEM_LIMIT)
    prop_cost = pl.CostEstimate(
        flops=2 * n_pad * n_pad * d_pad,
        transcendentals=0,
        bytes_accessed=n_pad * n_pad * 2 + 3 * n_pad * d_pad * 4)

    # ---- pass 1: h0 = A @ x ------------------------------------------------ #
    h0 = pl.pallas_call(
        prop_kernel,
        out_shape=jax.ShapeDtypeStruct((n_pad, d_pad), f32),
        grid=grid_prop,
        in_specs=[
            pl.BlockSpec((tile_m, tile_k), lambda i, k: (i, k)),   # A[i, k]
            pl.BlockSpec((tile_k, d_pad), lambda i, k: (k, 0)),    # x[k]
        ],
        out_specs=pl.BlockSpec((tile_m, d_pad), lambda i, k: (i, 0)),
        scratch_shapes=[pltpu.VMEM((tile_m, d_pad), jnp.float32)],
        compiler_params=prop_params,
        cost_estimate=prop_cost,
    )(adj_p, x)

    # ---- pass 2: x_hat = x + h0 + A @ h0 ----------------------------------- #
    x_hat_pad = pl.pallas_call(
        prop_combine_kernel,
        out_shape=jax.ShapeDtypeStruct((n_pad, d_pad), f32),
        grid=grid_prop,
        in_specs=[
            pl.BlockSpec((tile_m, tile_k), lambda i, k: (i, k)),   # A[i, k]
            pl.BlockSpec((tile_k, d_pad), lambda i, k: (k, 0)),    # h0[k] (matmul in)
            pl.BlockSpec((tile_m, d_pad), lambda i, k: (i, 0)),    # x[i]  (residual)
            pl.BlockSpec((tile_m, d_pad), lambda i, k: (i, 0)),    # h0[i] (residual)
        ],
        out_specs=pl.BlockSpec((tile_m, d_pad), lambda i, k: (i, 0)),
        scratch_shapes=[pltpu.VMEM((tile_m, d_pad), jnp.float32)],
        compiler_params=prop_params,
        cost_estimate=prop_cost,
    )(adj_p, h0, x, h0)

    return x_hat_pad[:n, :dim_latent], preference


# ------------------------- JAX glue / reference ----------------------------- #
def build_normalized_adjacency(edge_index, n):
    """Dense A with A[dst, src] += deg(src)^-0.5 * deg(dst)^-0.5 (Base_gcn norm).

    NOTE: edge_index must contain both directions of every user-item edge
    (as MENTOR constructs it); the single src-built degree array is only
    equivalent to deg(src)*deg(dst) normalization under that assumption.
    """
    row, col = edge_index[0], edge_index[1]            # src, dst
    deg = jnp.zeros((n,), jnp.float32).at[row].add(1.0)
    deg_inv_sqrt = deg ** -0.5                         # inf at deg=0 never gathered
    norm = deg_inv_sqrt[row] * deg_inv_sqrt[col]
    return jnp.zeros((n, n), jnp.float32).at[col, row].add(norm)


def reference_forward(preference, features, w1, b1, w2, b2, adj):
    h = features @ w1 + b1.reshape(1, -1)
    h = jnp.where(h > 0, h, 0.01 * h)
    temp = h @ w2 + b2.reshape(1, -1)
    x = jnp.concatenate([preference, temp], axis=0)
    x = x / jnp.maximum(jnp.linalg.norm(x, axis=-1, keepdims=True), 1e-12)
    a = adj.astype(jnp.bfloat16).astype(jnp.float32)   # mirror kernel A data prep
    h0 = a @ x
    h1 = a @ h0
    return x + h0 + h1


# ---------------------------------- main ------------------------------------ #
if __name__ == "__main__":
    num_user, num_item = 8, 16
    dim_feat, dim_latent = 32, 16
    n_nodes = num_user + num_item

    key = jax.random.PRNGKey(0)
    k_pref, k_feat, k_w1, k_b1, k_w2, k_b2, k_eu, k_ei = jax.random.split(key, 8)

    # preference: xavier_normal_(gain=1) -> std = sqrt(2 / (fan_in + fan_out))
    pref_std = np.sqrt(2.0 / (num_user + dim_latent))
    preference = pref_std * jax.random.normal(k_pref, (num_user, dim_latent),
                                              dtype=jnp.float32)
    features = jax.random.normal(k_feat, (num_item, dim_feat), dtype=jnp.float32)

    # MLP: dim_feat -> 4*dim_latent ; MLP_1: 4*dim_latent -> dim_latent
    hid = 4 * dim_latent
    lim1 = 1.0 / np.sqrt(dim_feat)
    w1 = jax.random.uniform(k_w1, (dim_feat, hid), jnp.float32, -lim1, lim1)
    b1 = jax.random.uniform(k_b1, (1, hid), jnp.float32, -lim1, lim1)
    lim2 = 1.0 / np.sqrt(hid)
    w2 = jax.random.uniform(k_w2, (hid, dim_latent), jnp.float32, -lim2, lim2)
    b2 = jax.random.uniform(k_b2, (1, dim_latent), jnp.float32, -lim2, lim2)

    # bidirectional user-item edge list (no self loops by construction)
    n_edges = 40
    users = jax.random.randint(k_eu, (n_edges,), 0, num_user)
    items = num_user + jax.random.randint(k_ei, (n_edges,), 0, num_item)
    edge_index = jnp.stack([jnp.concatenate([users, items]),
                            jnp.concatenate([items, users])], axis=0)

    adj = build_normalized_adjacency(edge_index, n_nodes)

    x_hat, pref_out = gcn_forward(preference, features, w1, b1, w2, b2, adj)
    x_hat = jax.block_until_ready(x_hat)

    x_hat_ref = reference_forward(preference, features, w1, b1, w2, b2, adj)
    assert x_hat.shape == (n_nodes, dim_latent)
    assert pref_out.shape == (num_user, dim_latent)
    assert np.allclose(np.asarray(x_hat), np.asarray(x_hat_ref),
                       rtol=5e-4, atol=5e-4), \
        np.max(np.abs(np.asarray(x_hat) - np.asarray(x_hat_ref)))

    print("KERNEL_OK")
</pallas_src>

<mosaic_0001>
module attributes {stable_mosaic.version = 11 : i64} {
  func.func @mlp_kernel(%arg0: i32, %arg1: memref<256x128xf32, #tpu.memory_space<vmem>>, %arg2: memref<128x128xf32, #tpu.memory_space<vmem>>, %arg3: memref<1x128xf32, #tpu.memory_space<vmem>>, %arg4: memref<128x128xf32, #tpu.memory_space<vmem>>, %arg5: memref<1x128xf32, #tpu.memory_space<vmem>>, %arg6: memref<256x128xf32, #tpu.memory_space<vmem>>) attributes {dimension_semantics = [#tpu.dimension_semantics<parallel>], iteration_bounds = array<i64: 1>, scalar_prefetch = 0 : i64, scratch_operands = 0 : i64, tpu.core_type = #tpu.core_type<tc>, window_params = [{transform_indices = @transform_0, window_bounds = array<i64: 256, 128>}, {pipeline_mode = #tpu.pipeline_mode<synchronous>, transform_indices = @transform_1, window_bounds = array<i64: 128, 128>}, {pipeline_mode = #tpu.pipeline_mode<synchronous>, transform_indices = @transform_2, window_bounds = array<i64: 1, 128>}, {pipeline_mode = #tpu.pipeline_mode<synchronous>, transform_indices = @transform_3, window_bounds = array<i64: 128, 128>}, {pipeline_mode = #tpu.pipeline_mode<synchronous>, transform_indices = @transform_4, window_bounds = array<i64: 1, 128>}, {transform_indices = @transform_5, window_bounds = array<i64: 256, 128>}]} {
    %c0 = arith.constant 0 : index
    %c0_0 = arith.constant 0 : index
    %0 = vector.load %arg1[%c0, %c0_0] : memref<256x128xf32, #tpu.memory_space<vmem>>, vector<256x128xf32>
    %c0_1 = arith.constant 0 : index
    %c0_2 = arith.constant 0 : index
    %1 = vector.load %arg2[%c0_1, %c0_2] : memref<128x128xf32, #tpu.memory_space<vmem>>, vector<128x128xf32>
    %cst = arith.constant dense<0.000000e+00> : vector<256x128xf32>
    %2 = tpu.matmul %0, %1, %cst {dimension_numbers = #tpu.dot_dimension_numbers<[1], [0], [0], [1], [0, 0, 1, 1], [], []>} : vector<256x128xf32>, vector<128x128xf32>, vector<256x128xf32> -> vector<256x128xf32>
    %c0_3 = arith.constant 0 : index
    %c0_4 = arith.constant 0 : index
    %3 = vector.load %arg3[%c0_3, %c0_4] : memref<1x128xf32, #tpu.memory_space<vmem>>, vector<1x128xf32>
    %4 = vector.broadcast %3 : vector<1x128xf32> to vector<256x128xf32>
    %5 = arith.addf %2, %4 : vector<256x128xf32>
    %cst_5 = arith.constant 0.000000e+00 : f32
    %6 = vector.broadcast %cst_5 : f32 to vector<256x128xf32>
    %7 = arith.cmpf ogt, %5, %6 : vector<256x128xf32>
    %cst_6 = arith.constant 0.00999999977 : f32
    %8 = vector.broadcast %cst_6 : f32 to vector<256x128xf32>
    %9 = arith.mulf %8, %5 : vector<256x128xf32>
    %10 = arith.select %7, %5, %9 : vector<256x128xi1>, vector<256x128xf32>
    %c0_7 = arith.constant 0 : index
    %c0_8 = arith.constant 0 : index
    %11 = vector.load %arg4[%c0_7, %c0_8] : memref<128x128xf32, #tpu.memory_space<vmem>>, vector<128x128xf32>
    %cst_9 = arith.constant dense<0.000000e+00> : vector<256x128xf32>
    %12 = tpu.matmul %10, %11, %cst_9 {dimension_numbers = #tpu.dot_dimension_numbers<[1], [0], [0], [1], [0, 0, 1, 1], [], []>} : vector<256x128xf32>, vector<128x128xf32>, vector<256x128xf32> -> vector<256x128xf32>
    %c0_10 = arith.constant 0 : index
    %c0_11 = arith.constant 0 : index
    %13 = vector.load %arg5[%c0_10, %c0_11] : memref<1x128xf32, #tpu.memory_space<vmem>>, vector<1x128xf32>
    %14 = vector.broadcast %13 : vector<1x128xf32> to vector<256x128xf32>
    %15 = arith.addf %12, %14 : vector<256x128xf32>
    %c0_12 = arith.constant 0 : index
    %c0_13 = arith.constant 0 : index
    %16 = vector.load %arg6[%c0_12, %c0_13] : memref<256x128xf32, #tpu.memory_space<vmem>>, vector<256x128xf32>
    tpu.vector_store %arg6[%c0_12, %c0_13], %15 {strides = array<i32>} : memref<256x128xf32, #tpu.memory_space<vmem>>, vector<256x128xf32>,
    return
  }
  func.func @transform_0(%arg0: i32) -> (i32, i32) {
    %c0_i32 = arith.constant 0 : i32
    %c0_i32_0 = arith.constant 0 : i32
    return %arg0, %c0_i32 : i32, i32
  }
  func.func @transform_1(%arg0: i32) -> (i32, i32) {
    %c0_i32 = arith.constant 0 : i32
    %c0_i32_0 = arith.constant 0 : i32
    %c0_i32_1 = arith.constant 0 : i32
    return %c0_i32, %c0_i32_0 : i32, i32
  }
  func.func @transform_2(%arg0: i32) -> (i32, i32) {
    %c0_i32 = arith.constant 0 : i32
    %c0_i32_0 = arith.constant 0 : i32
    %c0_i32_1 = arith.constant 0 : i32
    return %c0_i32, %c0_i32_0 : i32, i32
  }
  func.func @transform_3(%arg0: i32) -> (i32, i32) {
    %c0_i32 = arith.constant 0 : i32
    %c0_i32_0 = arith.constant 0 : i32
    %c0_i32_1 = arith.constant 0 : i32
    return %c0_i32, %c0_i32_0 : i32, i32
  }
  func.func @transform_4(%arg0: i32) -> (i32, i32) {
    %c0_i32 = arith.constant 0 : i32
    %c0_i32_0 = arith.constant 0 : i32
    %c0_i32_1 = arith.constant 0 : i32
    return %c0_i32, %c0_i32_0 : i32, i32
  }
  func.func @transform_5(%arg0: i32) -> (i32, i32) {
    %c0_i32 = arith.constant 0 : i32
    %c0_i32_0 = arith.constant 0 : i32
    return %arg0, %c0_i32 : i32, i32
  }
}

</mosaic_0001>

<llo_original>
// kernel: tpu_custom_call.1
$region0: #{tpu_custom_call.1}
  #allocation0 [shape = 'u32[]', space=smem, size = 0x4, offset = 0x4, fixed_abs, tag = 'smem constant byte address 0x4 - core index']
  #allocation1 [shape = 'u32[144,128]{1,0:T(1,128)}', space=vmem, size = 0x12000, scoped, tag = 'internal scratch']
  %s0 = inlined_call_operand.hbm [shape: f32[256,128], index: 0, kind: input, shape index: {}]
  %s1 = inlined_call_operand.hbm [shape: f32[128,128], index: 1, kind: input, shape index: {}]
  %s2 = inlined_call_operand.vmem [shape: f32[1,128], index: 2, kind: input, shape index: {}]
  %s3 = inlined_call_operand.hbm [shape: f32[128,128], index: 3, kind: input, shape index: {}]
  %s4 = inlined_call_operand.vmem [shape: f32[1,128], index: 4, kind: input, shape index: {}]
  %s5 = inlined_call_operand.hbm [shape: f32[256,128], index: 5, kind: output, shape index: {}]
  %s6 = sld [smem:[#allocation0]]
  $region42: #{tpu_custom_call.1} parent=0
    _
  %s8 = ssub.s32 1, %s6
  %s9 = scalar_select 0, %s8, %s6
  $region1: #{tpu_custom_call.1} parent=0
    #allocation2 [shape = 'u8[131072]{0}', space=vmem, size = 0x20000, scoped, tag = 'input window, operand 0, single buffered']
    #allocation3 [shape = 's32[1]{0}', space=sflag, size = 0x4, scoped, tag = 'scoped memory for tpu_custom_call.1']
    #allocation4 [shape = 's32[1]{0}', space=sflag, size = 0x4, scoped, tag = 'scoped memory for tpu_custom_call.1']
    #allocation5 [shape = 'u8[65536]{0}', space=vmem, size = 0x10000, scoped, tag = 'input window, operand 1, single buffered']
    #allocation6 [shape = 's32[1]{0}', space=sflag, size = 0x4, scoped, tag = 'scoped memory for tpu_custom_call.1']
    #allocation7 [shape = 'u8[65536]{0}', space=vmem, size = 0x10000, scoped, tag = 'input window, operand 3, single buffered']
    #allocation8 [shape = 'u8[131072]{0}', space=vmem, size = 0x20000, scoped, tag = 'output window, operand 0, single buffered']
    %10 = vsyncpa [#allocation3], 0
    %11 = vsyncpa [#allocation6], 0
    %12 = vsyncpa [#allocation4], 0
    // Predicated region
    $region2: #{tpu_custom_call.1} parent=1 // pred_check
      _
    $region3: #{tpu_custom_call.1} parent=1 // pred_check_branch
      %14 = sbr.rel (0) target = $region5
    $region4: #{tpu_custom_call.1} parent=1 // pred_region
      %s16 = ssub.s32 4096, 4096
      %17 = vsyncadd [#allocation3], %s16
      %s18 = sshll.u32 [#allocation2], 4
      %s19 = int_to_ptr.vmem [resolvable:$true] %s18
      %24 = dma.hbm_to_vmem [thread:$0]  %s0, 4096, %s19, [#allocation3], 128, 128, 8
    $region5: #{tpu_custom_call.1} parent=1 // pred_fallthru
      _
    // Predicated region
    $region6: #{tpu_custom_call.1} parent=1 // pred_check
      _
    $region7: #{tpu_custom_call.1} parent=1 // pred_check_branch
      %26 = sbr.rel (0) target = $region9
    $region8: #{tpu_custom_call.1} parent=1 // pred_region
      %s28 = ssub.s32 2048, 2048
      %29 = vsyncadd [#allocation6], %s28
      %s30 = sshll.u32 [#allocation5], 4
      %s31 = int_to_ptr.vmem [resolvable:$true] %s30
      %36 = dma.hbm_to_vmem [thread:$0]  %s1, 2048, %s31, [#allocation6], 128, 128, 8
    $region9: #{tpu_custom_call.1} parent=1 // pred_fallthru
      _
    // Predicated region
    $region10: #{tpu_custom_call.1} parent=1 // pred_check
      _
    $region11: #{tpu_custom_call.1} parent=1 // pred_check_branch
      %38 = sbr.rel (0) target = $region13
    $region12: #{tpu_custom_call.1} parent=1 // pred_region
      _
    $region13: #{tpu_custom_call.1} parent=1 // pred_fallthru
      _
    // Predicated region
    $region14: #{tpu_custom_call.1} parent=1 // pred_check
      _
    $region15: #{tpu_custom_call.1} parent=1 // pred_check_branch
      %40 = sbr.rel (0) target = $region17
    $region16: #{tpu_custom_call.1} parent=1 // pred_region
      %s42 = ssub.s32 2048, 2048
      %43 = vsyncadd [#allocation6], %s42
      %s44 = sshll.u32 [#allocation7], 4
      %s45 = int_to_ptr.vmem [resolvable:$true] %s44
      %50 = dma.hbm_to_vmem [thread:$0]  %s3, 2048, %s45, [#allocation6], 128, 128, 8
    $region17: #{tpu_custom_call.1} parent=1 // pred_fallthru
      _
    // Predicated region
    $region18: #{tpu_custom_call.1} parent=1 // pred_check
      _
    $region19: #{tpu_custom_call.1} parent=1 // pred_check_branch
      %52 = sbr.rel (0) target = $region21
    $region20: #{tpu_custom_call.1} parent=1 // pred_region
      _
    $region21: #{tpu_custom_call.1} parent=1 // pred_fallthru
      _
    // Predicated region
    $region22: #{tpu_custom_call.1} parent=1 // pred_check
      _
    $region23: #{tpu_custom_call.1} parent=1 // pred_check_branch
      %54 = sbr.rel (0) target = $region25
    $region24: #{tpu_custom_call.1} parent=1 // pred_region
      %55 = dma.done [#allocation3], 4096
    $region25: #{tpu_custom_call.1} parent=1 // pred_fallthru
      _
    // Predicated region
    $region26: #{tpu_custom_call.1} parent=1 // pred_check
      _
    $region27: #{tpu_custom_call.1} parent=1 // pred_check_branch
      %57 = sbr.rel (0) target = $region29
    $region28: #{tpu_custom_call.1} parent=1 // pred_region
      %58 = dma.done [#allocation6], 2048
    $region29: #{tpu_custom_call.1} parent=1 // pred_fallthru
      _
    // Predicated region
    $region30: #{tpu_custom_call.1} parent=1 // pred_check
      _
    $region31: #{tpu_custom_call.1} parent=1 // pred_check_branch
      %60 = sbr.rel (0) target = $region33
    $region32: #{tpu_custom_call.1} parent=1 // pred_region
      %61 = dma.done [#allocation6], 2048
    $region33: #{tpu_custom_call.1} parent=1 // pred_fallthru
      _
    %v62 = vld [vmem:[#allocation2] sm:$0xff]
    %v63 = vld [vmem:[#allocation2 + $0x8] sm:$0xff]
    %v64 = vld [vmem:[#allocation2 + $0x10] sm:$0xff]
    %v65 = vld [vmem:[#allocation2 + $0x18] sm:$0xff]
    %v66 = vld [vmem:[#allocation2 + $0x20] sm:$0xff]
    %v67 = vld [vmem:[#allocation2 + $0x28] sm:$0xff]
    %v68 = vld [vmem:[#allocation2 + $0x30] sm:$0xff]
    %v69 = vld [vmem:[#allocation2 + $0x38] sm:$0xff]
    %v70 = vld [vmem:[#allocation2 + $0x40] sm:$0xff]
    %v71 = vld [vmem:[#allocation2 + $0x48] sm:$0xff]
    %v72 = vld [vmem:[#allocation2 + $0x50] sm:$0xff]
    %v73 = vld [vmem:[#allocation2 + $0x58] sm:$0xff]
    %v74 = vld [vmem:[#allocation2 + $0x60] sm:$0xff]
    %v75 = vld [vmem:[#allocation2 + $0x68] sm:$0xff]
    %v76 = vld [vmem:[#allocation2 + $0x70] sm:$0xff]
    %v77 = vld [vmem:[#allocation2 + $0x78] sm:$0xff]
    %v78 = vld [vmem:[#allocation2 + $0x80] sm:$0xff]
    %v79 = vld [vmem:[#allocation2 + $0x88] sm:$0xff]
    %v80 = vld [vmem:[#allocation2 + $0x90] sm:$0xff]
    %v81 = vld [vmem:[#allocation2 + $0x98] sm:$0xff]
    %v82 = vld [vmem:[#allocation2 + $0xa0] sm:$0xff]
    %v83 = vld [vmem:[#allocation2 + $0xa8] sm:$0xff]
    %v84 = vld [vmem:[#allocation2 + $0xb0] sm:$0xff]
    %v85 = vld [vmem:[#allocation2 + $0xb8] sm:$0xff]
    %v86 = vld [vmem:[#allocation2 + $0xc0] sm:$0xff]
    %v87 = vld [vmem:[#allocation2 + $0xc8] sm:$0xff]
    %v88 = vld [vmem:[#allocation2 + $0xd0] sm:$0xff]
    %v89 = vld [vmem:[#allocation2 + $0xd8] sm:$0xff]
    %v90 = vld [vmem:[#allocation2 + $0xe0] sm:$0xff]
    %v91 = vld [vmem:[#allocation2 + $0xe8] sm:$0xff]
    %v92 = vld [vmem:[#allocation2 + $0xf0] sm:$0xff]
    %v93 = vld [vmem:[#allocation2 + $0xf8] sm:$0xff]
    %v94 = vld [vmem:[#allocation5] sm:$0xff]
    %v95 = vld [vmem:[#allocation5 + $0x8] sm:$0xff]
    %v96 = vld [vmem:[#allocation5 + $0x10] sm:$0xff]
    %v97 = vld [vmem:[#allocation5 + $0x18] sm:$0xff]
    %v98 = vld [vmem:[#allocation5 + $0x20] sm:$0xff]
    %v99 = vld [vmem:[#allocation5 + $0x28] sm:$0xff]
    %v100 = vld [vmem:[#allocation5 + $0x30] sm:$0xff]
    %v101 = vld [vmem:[#allocation5 + $0x38] sm:$0xff]
    %v102 = vld [vmem:[#allocation5 + $0x40] sm:$0xff]
    %v103 = vld [vmem:[#allocation5 + $0x48] sm:$0xff]
    %v104 = vld [vmem:[#allocation5 + $0x50] sm:$0xff]
    %v105 = vld [vmem:[#allocation5 + $0x58] sm:$0xff]
    %v106 = vld [vmem:[#allocation5 + $0x60] sm:$0xff]
    %v107 = vld [vmem:[#allocation5 + $0x68] sm:$0xff]
    %v108 = vld [vmem:[#allocation5 + $0x70] sm:$0xff]
    %v109 = vld [vmem:[#allocation5 + $0x78] sm:$0xff]
    %v110 = vld [vmem:[%s2] sm:$0x1]
    %v112 = vlaneseq
    %v113 = vshrl.u32 %v112, 7
    %v114 = vsub.s32 0, %v113
    %v115 = vrot.slane %v110, %v114
    %117 = vmatprep.subr.mxu0 0.0
    %118 = vmatpush1.msra.mxu0 %v109
    %119 = vmatprep.subr.mxu0 0.0
    %120 = vmatpush1.msra.mxu0 %v108
    %121 = vmatprep.subr.mxu0 0.0
    %122 = vmatpush1.msra.mxu0 %v107
    %123 = vmatprep.subr.mxu0 0.0
    %124 = vmatpush1.msra.mxu0 %v106
    %125 = vmatprep.subr.mxu0 0.0
    %126 = vmatpush1.msra.mxu0 %v105
    %127 = vmatprep.subr.mxu0 0.0
    %128 = vmatpush1.msra.mxu0 %v104
    %129 = vmatprep.subr.mxu0 0.0
    %130 = vmatpush1.msra.mxu0 %v103
    %131 = vmatprep.subr.mxu0 0.0
    %132 = vmatpush1.msra.mxu0 %v102
    %133 = vmatprep.subr.mxu0 0.0
    %134 = vmatpush1.msra.mxu0 %v101
    %135 = vmatprep.subr.mxu0 0.0
    %136 = vmatpush1.msra.mxu0 %v100
    %137 = vmatprep.subr.mxu0 0.0
    %138 = vmatpush1.msra.mxu0 %v99
    %139 = vmatprep.subr.mxu0 0.0
    %140 = vmatpush1.msra.mxu0 %v98
    %141 = vmatprep.subr.mxu0 0.0
    %142 = vmatpush1.msra.mxu0 %v97
    %143 = vmatprep.subr.mxu0 0.0
    %144 = vmatpush1.msra.mxu0 %v96
    %145 = vmatprep.subr.mxu0 0.0
    %146 = vmatpush1.msra.mxu0 %v95
    %147 = vmatprep.subr.mxu0 0.0
    %148 = vmatpush1.msra.mxu0 %v94
    %149 = vmatprep.subr.mxu0 0.0
    %150 = vmatpush2.msra.mxu0 0.0
    %151 = vmatprep.subr.mxu0 0.0
    %152 = vmatpush2.msra.mxu0 0.0
    %153 = vmatprep.subr.mxu0 0.0
    %154 = vmatpush2.msra.mxu0 0.0
    %155 = vmatprep.subr.mxu0 0.0
    %156 = vmatpush2.msra.mxu0 0.0
    %157 = vmatprep.subr.mxu0 0.0
    %158 = vmatpush2.msra.mxu0 0.0
    %159 = vmatprep.subr.mxu0 0.0
    %160 = vmatpush2.msra.mxu0 0.0
    %161 = vmatprep.subr.mxu0 0.0
    %162 = vmatpush2.msra.mxu0 0.0
    %163 = vmatprep.subr.mxu0 0.0
    %164 = vmatpush2.msra.mxu0 0.0
    %165 = vmatprep.subr.mxu0 0.0
    %166 = vmatpush2.msra.mxu0 0.0
    %167 = vmatprep.subr.mxu0 0.0
    %168 = vmatpush2.msra.mxu0 0.0
    %169 = vmatprep.subr.mxu0 0.0
    %170 = vmatpush2.msra.mxu0 0.0
    %171 = vmatprep.subr.mxu0 0.0
    %172 = vmatpush2.msra.mxu0 0.0
    %173 = vmatprep.subr.mxu0 0.0
    %174 = vmatpush2.msra.mxu0 0.0
    %175 = vmatprep.subr.mxu0 0.0
    %176 = vmatpush2.msra.mxu0 0.0
    %177 = vmatprep.subr.mxu0 0.0
    %178 = vmatpush2.msra.mxu0 0.0
    %179 = vmatprep.subr.mxu0 0.0
    %180 = vmatpush2.msra.mxu0 0.0
    %181 = vmatprep.mubr.f32.mxu0 0.0
    %182 = vmatmul.mubr.f32.gmra.mxu0 %v62
    %v183 = vpop.f32.mrf.mxu0
    %v184 = vadd.f32 %v115, %v183
    %v185 = vpop.f32.mrf.mxu0
    %186 = vmatprep.mubr.f32.mxu0 0.0
    %187 = vmatmul.mubr.f32.gmra.mxu0 %v63
    %v188 = vpop.f32.mrf.mxu0
    %v189 = vadd.f32 %v115, %v188
    %v190 = vpop.f32.mrf.mxu0
    %191 = vmatprep.mubr.f32.mxu0 0.0
    %192 = vmatmul.mubr.f32.gmra.mxu0 %v64
    %v193 = vpop.f32.mrf.mxu0
    %v194 = vadd.f32 %v115, %v193
    %v195 = vpop.f32.mrf.mxu0
    %196 = vmatprep.mubr.f32.mxu0 0.0
    %197 = vmatmul.mubr.f32.gmra.mxu0 %v65
    %v198 = vpop.f32.mrf.mxu0
    %v199 = vadd.f32 %v115, %v198
    %v200 = vpop.f32.mrf.mxu0
    %201 = vmatprep.mubr.f32.mxu0 0.0
    %202 = vmatmul.mubr.f32.gmra.mxu0 %v66
    %v203 = vpop.f32.mrf.mxu0
    %v204 = vadd.f32 %v115, %v203
    %v205 = vpop.f32.mrf.mxu0
    %206 = vmatprep.mubr.f32.mxu0 0.0
    %207 = vmatmul.mubr.f32.gmra.mxu0 %v67
    %v208 = vpop.f32.mrf.mxu0
    %v209 = vadd.f32 %v115, %v208
    %v210 = vpop.f32.mrf.mxu0
    %211 = vmatprep.mubr.f32.mxu0 0.0
    %212 = vmatmul.mubr.f32.gmra.mxu0 %v68
    %v213 = vpop.f32.mrf.mxu0
    %v214 = vadd.f32 %v115, %v213
    %v215 = vpop.f32.mrf.mxu0
    %216 = vmatprep.mubr.f32.mxu0 0.0
    %217 = vmatmul.mubr.f32.gmra.mxu0 %v69
    %v218 = vpop.f32.mrf.mxu0
    %v219 = vadd.f32 %v115, %v218
    %v220 = vpop.f32.mrf.mxu0
    %221 = vmatprep.mubr.f32.mxu0 0.0
    %222 = vmatmul.mubr.f32.gmra.mxu0 %v70
    %v223 = vpop.f32.mrf.mxu0
    %v224 = vadd.f32 %v115, %v223
    %v225 = vpop.f32.mrf.mxu0
    %226 = vmatprep.mubr.f32.mxu0 0.0
    %227 = vmatmul.mubr.f32.gmra.mxu0 %v71
    %v228 = vpop.f32.mrf.mxu0
    %v229 = vadd.f32 %v115, %v228
    %v230 = vpop.f32.mrf.mxu0
    %231 = vmatprep.mubr.f32.mxu0 0.0
    %232 = vmatmul.mubr.f32.gmra.mxu0 %v72
    %v233 = vpop.f32.mrf.mxu0
    %v234 = vadd.f32 %v115, %v233
    %v235 = vpop.f32.mrf.mxu0
    %236 = vmatprep.mubr.f32.mxu0 0.0
    %237 = vmatmul.mubr.f32.gmra.mxu0 %v73
    %v238 = vpop.f32.mrf.mxu0
    %v239 = vadd.f32 %v115, %v238
    %v240 = vpop.f32.mrf.mxu0
    %241 = vmatprep.mubr.f32.mxu0 0.0
    %242 = vmatmul.mubr.f32.gmra.mxu0 %v74
    %v243 = vpop.f32.mrf.mxu0
    %v244 = vadd.f32 %v115, %v243
    %v245 = vpop.f32.mrf.mxu0
    %246 = vmatprep.mubr.f32.mxu0 0.0
    %247 = vmatmul.mubr.f32.gmra.mxu0 %v75
    %v248 = vpop.f32.mrf.mxu0
    %v249 = vadd.f32 %v115, %v248
    %v250 = vpop.f32.mrf.mxu0
    %251 = vmatprep.mubr.f32.mxu0 0.0
    %252 = vmatmul.mubr.f32.gmra.mxu0 %v76
    %v253 = vpop.f32.mrf.mxu0
    %v254 = vadd.f32 %v115, %v253
    %v255 = vpop.f32.mrf.mxu0
    %256 = vmatprep.mubr.f32.mxu0 0.0
    %257 = vmatmul.mubr.f32.gmra.mxu0 %v77
    %v258 = vpop.f32.mrf.mxu0
    %v259 = vadd.f32 %v115, %v258
    %v260 = vpop.f32.mrf.mxu0
    %261 = vmatprep.mubr.f32.mxu0 0.0
    %262 = vmatmul.mubr.f32.gmra.mxu0 %v78
    %v263 = vpop.f32.mrf.mxu0
    %v264 = vadd.f32 %v115, %v263
    %v265 = vpop.f32.mrf.mxu0
    %266 = vmatprep.mubr.f32.mxu0 0.0
    %267 = vmatmul.mubr.f32.gmra.mxu0 %v79
    %v268 = vpop.f32.mrf.mxu0
    %v269 = vadd.f32 %v115, %v268
    %v270 = vpop.f32.mrf.mxu0
    %271 = vmatprep.mubr.f32.mxu0 0.0
    %272 = vmatmul.mubr.f32.gmra.mxu0 %v80
    %v273 = vpop.f32.mrf.mxu0
    %v274 = vadd.f32 %v115, %v273
    %v275 = vpop.f32.mrf.mxu0
    %276 = vmatprep.mubr.f32.mxu0 0.0
    %277 = vmatmul.mubr.f32.gmra.mxu0 %v81
    %v278 = vpop.f32.mrf.mxu0
    %v279 = vadd.f32 %v115, %v278
    %v280 = vpop.f32.mrf.mxu0
    %281 = vmatprep.mubr.f32.mxu0 0.0
    %282 = vmatmul.mubr.f32.gmra.mxu0 %v82
    %v283 = vpop.f32.mrf.mxu0
    %v284 = vadd.f32 %v115, %v283
    %v285 = vpop.f32.mrf.mxu0
    %286 = vmatprep.mubr.f32.mxu0 0.0
    %287 = vmatmul.mubr.f32.gmra.mxu0 %v83
    %v288 = vpop.f32.mrf.mxu0
    %v289 = vadd.f32 %v115, %v288
    %v290 = vpop.f32.mrf.mxu0
    %291 = vmatprep.mubr.f32.mxu0 0.0
    %292 = vmatmul.mubr.f32.gmra.mxu0 %v84
    %v293 = vpop.f32.mrf.mxu0
    %v294 = vadd.f32 %v115, %v293
    %v295 = vpop.f32.mrf.mxu0
    %296 = vmatprep.mubr.f32.mxu0 0.0
    %297 = vmatmul.mubr.f32.gmra.mxu0 %v85
    %v298 = vpop.f32.mrf.mxu0
    %v299 = vadd.f32 %v115, %v298
    %v300 = vpop.f32.mrf.mxu0
    %301 = vmatprep.mubr.f32.mxu0 0.0
    %302 = vmatmul.mubr.f32.gmra.mxu0 %v86
    %v303 = vpop.f32.mrf.mxu0
    %v304 = vadd.f32 %v115, %v303
    %v305 = vpop.f32.mrf.mxu0
    %306 = vmatprep.mubr.f32.mxu0 0.0
    %307 = vmatmul.mubr.f32.gmra.mxu0 %v87
    %v308 = vpop.f32.mrf.mxu0
    %v309 = vadd.f32 %v115, %v308
    %v310 = vpop.f32.mrf.mxu0
    %311 = vmatprep.mubr.f32.mxu0 0.0
    %312 = vmatmul.mubr.f32.gmra.mxu0 %v88
    %v313 = vpop.f32.mrf.mxu0
    %v314 = vadd.f32 %v115, %v313
    %v315 = vpop.f32.mrf.mxu0
    %316 = vmatprep.mubr.f32.mxu0 0.0
    %317 = vmatmul.mubr.f32.gmra.mxu0 %v89
    %v318 = vpop.f32.mrf.mxu0
    %v319 = vadd.f32 %v115, %v318
    %v320 = vpop.f32.mrf.mxu0
    %321 = vmatprep.mubr.f32.mxu0 0.0
    %322 = vmatmul.mubr.f32.gmra.mxu0 %v90
    %v323 = vpop.f32.mrf.mxu0
    %v324 = vadd.f32 %v115, %v323
    %v325 = vpop.f32.mrf.mxu0
    %326 = vmatprep.mubr.f32.mxu0 0.0
    %327 = vmatmul.mubr.f32.gmra.mxu0 %v91
    %v328 = vpop.f32.mrf.mxu0
    %v329 = vadd.f32 %v115, %v328
    %v330 = vpop.f32.mrf.mxu0
    %331 = vmatprep.mubr.f32.mxu0 0.0
    %332 = vmatmul.mubr.f32.gmra.mxu0 %v92
    %v333 = vpop.f32.mrf.mxu0
    %v334 = vadd.f32 %v115, %v333
    %v335 = vpop.f32.mrf.mxu0
    %336 = vmatprep.mubr.f32.mxu0 0.0
    %337 = vmatmul.mubr.f32.gmra.mxu0 %v93
    %v338 = vpop.f32.mrf.mxu0
    %v339 = vadd.f32 %v115, %v338
    %v340 = vpop.f32.mrf.mxu0
    %341 = vdwg.mxu0
    %vm342 = vcmp.gt.f32.partialorder %v184, 0.0
    %vm343 = vcmp.gt.f32.partialorder %v189, 0.0
    %vm344 = vcmp.gt.f32.partialorder %v194, 0.0
    %vm345 = vcmp.gt.f32.partialorder %v199, 0.0
    %vm346 = vcmp.gt.f32.partialorder %v204, 0.0
    %vm347 = vcmp.gt.f32.partialorder %v209, 0.0
    %vm348 = vcmp.gt.f32.partialorder %v214, 0.0
    %vm349 = vcmp.gt.f32.partialorder %v219, 0.0
    %vm350 = vcmp.gt.f32.partialorder %v224, 0.0
    %vm351 = vcmp.gt.f32.partialorder %v229, 0.0
    %vm352 = vcmp.gt.f32.partialorder %v234, 0.0
    %vm353 = vcmp.gt.f32.partialorder %v239, 0.0
    %vm354 = vcmp.gt.f32.partialorder %v244, 0.0
    %vm355 = vcmp.gt.f32.partialorder %v249, 0.0
    %vm356 = vcmp.gt.f32.partialorder %v254, 0.0
    %vm357 = vcmp.gt.f32.partialorder %v259, 0.0
    %vm358 = vcmp.gt.f32.partialorder %v264, 0.0
    %vm359 = vcmp.gt.f32.partialorder %v269, 0.0
    %vm360 = vcmp.gt.f32.partialorder %v274, 0.0
    %vm361 = vcmp.gt.f32.partialorder %v279, 0.0
    %vm362 = vcmp.gt.f32.partialorder %v284, 0.0
    %vm363 = vcmp.gt.f32.partialorder %v289, 0.0
    %vm364 = vcmp.gt.f32.partialorder %v294, 0.0
    %vm365 = vcmp.gt.f32.partialorder %v299, 0.0
    %vm366 = vcmp.gt.f32.partialorder %v304, 0.0
    %vm367 = vcmp.gt.f32.partialorder %v309, 0.0
    %vm368 = vcmp.gt.f32.partialorder %v314, 0.0
    %vm369 = vcmp.gt.f32.partialorder %v319, 0.0
    %vm370 = vcmp.gt.f32.partialorder %v324, 0.0
    %vm371 = vcmp.gt.f32.partialorder %v329, 0.0
    %vm372 = vcmp.gt.f32.partialorder %v334, 0.0
    %vm373 = vcmp.gt.f32.partialorder %v339, 0.0
    %v374 = vmul.f32 %v184, 0.01
    %v375 = vmul.f32 %v189, 0.01
    %v376 = vmul.f32 %v194, 0.01
    %v377 = vmul.f32 %v199, 0.01
    %v378 = vmul.f32 %v204, 0.01
    %v379 = vmul.f32 %v209, 0.01
    %v380 = vmul.f32 %v214, 0.01
    %v381 = vmul.f32 %v219, 0.01
    %v382 = vmul.f32 %v224, 0.01
    %v383 = vmul.f32 %v229, 0.01
    %v384 = vmul.f32 %v234, 0.01
    %v385 = vmul.f32 %v239, 0.01
    %v386 = vmul.f32 %v244, 0.01
    %v387 = vmul.f32 %v249, 0.01
    %v388 = vmul.f32 %v254, 0.01
    %v389 = vmul.f32 %v259, 0.01
    %v390 = vmul.f32 %v264, 0.01
    %v391 = vmul.f32 %v269, 0.01
    %v392 = vmul.f32 %v274, 0.01
    %v393 = vmul.f32 %v279, 0.01
    %v394 = vmul.f32 %v284, 0.01
    %v395 = vmul.f32 %v289, 0.01
    %v396 = vmul.f32 %v294, 0.01
    %v397 = vmul.f32 %v299, 0.01
    %v398 = vmul.f32 %v304, 0.01
    %v399 = vmul.f32 %v309, 0.01
    %v400 = vmul.f32 %v314, 0.01
    %v401 = vmul.f32 %v319, 0.01
    %v402 = vmul.f32 %v324, 0.01
    %v403 = vmul.f32 %v329, 0.01
    %v404 = vmul.f32 %v334, 0.01
    %v405 = vmul.f32 %v339, 0.01
    %v406 = vsel %vm342, %v184, %v374
    %v407 = vsel %vm343, %v189, %v375
    %v408 = vsel %vm344, %v194, %v376
    %v409 = vsel %vm345, %v199, %v377
    %v410 = vsel %vm346, %v204, %v378
    %v411 = vsel %vm347, %v209, %v379
    %v412 = vsel %vm348, %v214, %v380
    %v413 = vsel %vm349, %v219, %v381
    %v414 = vsel %vm350, %v224, %v382
    %v415 = vsel %vm351, %v229, %v383
    %v416 = vsel %vm352, %v234, %v384
    %v417 = vsel %vm353, %v239, %v385
    %v418 = vsel %vm354, %v244, %v386
    %v419 = vsel %vm355, %v249, %v387
    %v420 = vsel %vm356, %v254, %v388
    %v421 = vsel %vm357, %v259, %v389
    %v422 = vsel %vm358, %v264, %v390
    %v423 = vsel %vm359, %v269, %v391
    %v424 = vsel %vm360, %v274, %v392
    %v425 = vsel %vm361, %v279, %v393
    %v426 = vsel %vm362, %v284, %v394
    %v427 = vsel %vm363, %v289, %v395
    %v428 = vsel %vm364, %v294, %v396
    %v429 = vsel %vm365, %v299, %v397
    %v430 = vsel %vm366, %v304, %v398
    %v431 = vsel %vm367, %v309, %v399
    %v432 = vsel %vm368, %v314, %v400
    %v433 = vsel %vm369, %v319, %v401
    %v434 = vsel %vm370, %v324, %v402
    %v435 = vsel %vm371, %v329, %v403
    %v436 = vsel %vm372, %v334, %v404
    %v437 = vsel %vm373, %v339, %v405
    %v438 = vld [vmem:[#allocation7] sm:$0xff]
    %v439 = vld [vmem:[#allocation7 + $0x8] sm:$0xff]
    %v440 = vld [vmem:[#allocation7 + $0x10] sm:$0xff]
    %v441 = vld [vmem:[#allocation7 + $0x18] sm:$0xff]
    %v442 = vld [vmem:[#allocation7 + $0x20] sm:$0xff]
    %v443 = vld [vmem:[#allocation7 + $0x28] sm:$0xff]
    %v444 = vld [vmem:[#allocation7 + $0x30] sm:$0xff]
    %v445 = vld [vmem:[#allocation7 + $0x38] sm:$0xff]
    %v446 = vld [vmem:[#allocation7 + $0x40] sm:$0xff]
    %v447 = vld [vmem:[#allocation7 + $0x48] sm:$0xff]
    %v448 = vld [vmem:[#allocation7 + $0x50] sm:$0xff]
    %v449 = vld [vmem:[#allocation7 + $0x58] sm:$0xff]
    %v450 = vld [vmem:[#allocation7 + $0x60] sm:$0xff]
    %v451 = vld [vmem:[#allocation7 + $0x68] sm:$0xff]
    %v452 = vld [vmem:[#allocation7 + $0x70] sm:$0xff]
    %v453 = vld [vmem:[#allocation7 + $0x78] sm:$0xff]
    %v454 = vld [vmem:[%s4] sm:$0x1]
    %v456 = vlaneseq
    %v457 = vshrl.u32 %v456, 7
    %v458 = vsub.s32 0, %v457
    %v459 = vrot.slane %v454, %v458
    %461 = vmatprep.subr.mxu0 0.0
    %462 = vmatpush1.msra.mxu0 %v453
    %463 = vmatprep.subr.mxu0 0.0
    %464 = vmatpush1.msra.mxu0 %v452
    %465 = vmatprep.subr.mxu0 0.0
    %466 = vmatpush1.msra.mxu0 %v451
    %467 = vmatprep.subr.mxu0 0.0
    %468 = vmatpush1.msra.mxu0 %v450
    %469 = vmatprep.subr.mxu0 0.0
    %470 = vmatpush1.msra.mxu0 %v449
    %471 = vmatprep.subr.mxu0 0.0
    %472 = vmatpush1.msra.mxu0 %v448
    %473 = vmatprep.subr.mxu0 0.0
    %474 = vmatpush1.msra.mxu0 %v447
    %475 = vmatprep.subr.mxu0 0.0
    %476 = vmatpush1.msra.mxu0 %v446
    %477 = vmatprep.subr.mxu0 0.0
    %478 = vmatpush1.msra.mxu0 %v445
    %479 = vmatprep.subr.mxu0 0.0
    %480 = vmatpush1.msra.mxu0 %v444
    %481 = vmatprep.subr.mxu0 0.0
    %482 = vmatpush1.msra.mxu0 %v443
    %483 = vmatprep.subr.mxu0 0.0
    %484 = vmatpush1.msra.mxu0 %v442
    %485 = vmatprep.subr.mxu0 0.0
    %486 = vmatpush1.msra.mxu0 %v441
    %487 = vmatprep.subr.mxu0 0.0
    %488 = vmatpush1.msra.mxu0 %v440
    %489 = vmatprep.subr.mxu0 0.0
    %490 = vmatpush1.msra.mxu0 %v439
    %491 = vmatprep.subr.mxu0 0.0
    %492 = vmatpush1.msra.mxu0 %v438
    %493 = vmatprep.subr.mxu0 0.0
    %494 = vmatpush2.msra.mxu0 0.0
    %495 = vmatprep.subr.mxu0 0.0
    %496 = vmatpush2.msra.mxu0 0.0
    %497 = vmatprep.subr.mxu0 0.0
    %498 = vmatpush2.msra.mxu0 0.0
    %499 = vmatprep.subr.mxu0 0.0
    %500 = vmatpush2.msra.mxu0 0.0
    %501 = vmatprep.subr.mxu0 0.0
    %502 = vmatpush2.msra.mxu0 0.0
    %503 = vmatprep.subr.mxu0 0.0
    %504 = vmatpush2.msra.mxu0 0.0
    %505 = vmatprep.subr.mxu0 0.0
    %506 = vmatpush2.msra.mxu0 0.0
    %507 = vmatprep.subr.mxu0 0.0
    %508 = vmatpush2.msra.mxu0 0.0
    %509 = vmatprep.subr.mxu0 0.0
    %510 = vmatpush2.msra.mxu0 0.0
    %511 = vmatprep.subr.mxu0 0.0
    %512 = vmatpush2.msra.mxu0 0.0
    %513 = vmatprep.subr.mxu0 0.0
    %514 = vmatpush2.msra.mxu0 0.0
    %515 = vmatprep.subr.mxu0 0.0
    %516 = vmatpush2.msra.mxu0 0.0
    %517 = vmatprep.subr.mxu0 0.0
    %518 = vmatpush2.msra.mxu0 0.0
    %519 = vmatprep.subr.mxu0 0.0
    %520 = vmatpush2.msra.mxu0 0.0
    %521 = vmatprep.subr.mxu0 0.0
    %522 = vmatpush2.msra.mxu0 0.0
    %523 = vmatprep.subr.mxu0 0.0
    %524 = vmatpush2.msra.mxu0 0.0
    %525 = vmatprep.mubr.f32.mxu0 0.0
    %526 = vmatmul.mubr.f32.gmra.mxu0 %v406
    %v527 = vpop.f32.mrf.mxu0
    %v528 = vadd.f32 %v459, %v527
    %v529 = vpop.f32.mrf.mxu0
    %530 = vmatprep.mubr.f32.mxu0 0.0
    %531 = vmatmul.mubr.f32.gmra.mxu0 %v407
    %v532 = vpop.f32.mrf.mxu0
    %v533 = vadd.f32 %v459, %v532
    %v534 = vpop.f32.mrf.mxu0
    %535 = vmatprep.mubr.f32.mxu0 0.0
    %536 = vmatmul.mubr.f32.gmra.mxu0 %v408
    %v537 = vpop.f32.mrf.mxu0
    %v538 = vadd.f32 %v459, %v537
    %v539 = vpop.f32.mrf.mxu0
    %540 = vmatprep.mubr.f32.mxu0 0.0
    %541 = vmatmul.mubr.f32.gmra.mxu0 %v409
    %v542 = vpop.f32.mrf.mxu0
    %v543 = vadd.f32 %v459, %v542
    %v544 = vpop.f32.mrf.mxu0
    %545 = vmatprep.mubr.f32.mxu0 0.0
    %546 = vmatmul.mubr.f32.gmra.mxu0 %v410
    %v547 = vpop.f32.mrf.mxu0
    %v548 = vadd.f32 %v459, %v547
    %v549 = vpop.f32.mrf.mxu0
    %550 = vmatprep.mubr.f32.mxu0 0.0
    %551 = vmatmul.mubr.f32.gmra.mxu0 %v411
    %v552 = vpop.f32.mrf.mxu0
    %v553 = vadd.f32 %v459, %v552
    %v554 = vpop.f32.mrf.mxu0
    %555 = vmatprep.mubr.f32.mxu0 0.0
    %556 = vmatmul.mubr.f32.gmra.mxu0 %v412
    %v557 = vpop.f32.mrf.mxu0
    %v558 = vadd.f32 %v459, %v557
    %v559 = vpop.f32.mrf.mxu0
    %560 = vmatprep.mubr.f32.mxu0 0.0
    %561 = vmatmul.mubr.f32.gmra.mxu0 %v413
    %v562 = vpop.f32.mrf.mxu0
    %v563 = vadd.f32 %v459, %v562
    %v564 = vpop.f32.mrf.mxu0
    %565 = vmatprep.mubr.f32.mxu0 0.0
    %566 = vmatmul.mubr.f32.gmra.mxu0 %v414
    %v567 = vpop.f32.mrf.mxu0
    %v568 = vadd.f32 %v459, %v567
    %v569 = vpop.f32.mrf.mxu0
    %570 = vmatprep.mubr.f32.mxu0 0.0
    %571 = vmatmul.mubr.f32.gmra.mxu0 %v415
    %v572 = vpop.f32.mrf.mxu0
    %v573 = vadd.f32 %v459, %v572
    %v574 = vpop.f32.mrf.mxu0
    %575 = vmatprep.mubr.f32.mxu0 0.0
    %576 = vmatmul.mubr.f32.gmra.mxu0 %v416
    %v577 = vpop.f32.mrf.mxu0
    %v578 = vadd.f32 %v459, %v577
    %v579 = vpop.f32.mrf.mxu0
    %580 = vmatprep.mubr.f32.mxu0 0.0
    %581 = vmatmul.mubr.f32.gmra.mxu0 %v417
    %v582 = vpop.f32.mrf.mxu0
    %v583 = vadd.f32 %v459, %v582
    %v584 = vpop.f32.mrf.mxu0
    %585 = vmatprep.mubr.f32.mxu0 0.0
    %586 = vmatmul.mubr.f32.gmra.mxu0 %v418
    %v587 = vpop.f32.mrf.mxu0
    %v588 = vadd.f32 %v459, %v587
    %v589 = vpop.f32.mrf.mxu0
    %590 = vmatprep.mubr.f32.mxu0 0.0
    %591 = vmatmul.mubr.f32.gmra.mxu0 %v419
    %v592 = vpop.f32.mrf.mxu0
    %v593 = vadd.f32 %v459, %v592
    %v594 = vpop.f32.mrf.mxu0
    %595 = vmatprep.mubr.f32.mxu0 0.0
    %596 = vmatmul.mubr.f32.gmra.mxu0 %v420
    %v597 = vpop.f32.mrf.mxu0
    %v598 = vadd.f32 %v459, %v597
    %v599 = vpop.f32.mrf.mxu0
    %600 = vmatprep.mubr.f32.mxu0 0.0
    %601 = vmatmul.mubr.f32.gmra.mxu0 %v421
    %v602 = vpop.f32.mrf.mxu0
    %v603 = vadd.f32 %v459, %v602
    %v604 = vpop.f32.mrf.mxu0
    %605 = vmatprep.mubr.f32.mxu0 0.0
    %606 = vmatmul.mubr.f32.gmra.mxu0 %v422
    %v607 = vpop.f32.mrf.mxu0
    %v608 = vadd.f32 %v459, %v607
    %v609 = vpop.f32.mrf.mxu0
    %610 = vmatprep.mubr.f32.mxu0 0.0
    %611 = vmatmul.mubr.f32.gmra.mxu0 %v423
    %v612 = vpop.f32.mrf.mxu0
    %v613 = vadd.f32 %v459, %v612
    %v614 = vpop.f32.mrf.mxu0
    %615 = vmatprep.mubr.f32.mxu0 0.0
    %616 = vmatmul.mubr.f32.gmra.mxu0 %v424
    %v617 = vpop.f32.mrf.mxu0
    %v618 = vadd.f32 %v459, %v617
    %v619 = vpop.f32.mrf.mxu0
    %620 = vmatprep.mubr.f32.mxu0 0.0
    %621 = vmatmul.mubr.f32.gmra.mxu0 %v425
    %v622 = vpop.f32.mrf.mxu0
    %v623 = vadd.f32 %v459, %v622
    %v624 = vpop.f32.mrf.mxu0
    %625 = vmatprep.mubr.f32.mxu0 0.0
    %626 = vmatmul.mubr.f32.gmra.mxu0 %v426
    %v627 = vpop.f32.mrf.mxu0
    %v628 = vadd.f32 %v459, %v627
    %v629 = vpop.f32.mrf.mxu0
    %630 = vmatprep.mubr.f32.mxu0 0.0
    %631 = vmatmul.mubr.f32.gmra.mxu0 %v427
    %v632 = vpop.f32.mrf.mxu0
    %v633 = vadd.f32 %v459, %v632
    %v634 = vpop.f32.mrf.mxu0
    %635 = vmatprep.mubr.f32.mxu0 0.0
    %636 = vmatmul.mubr.f32.gmra.mxu0 %v428
    %v637 = vpop.f32.mrf.mxu0
    %v638 = vadd.f32 %v459, %v637
    %v639 = vpop.f32.mrf.mxu0
    %640 = vmatprep.mubr.f32.mxu0 0.0
    %641 = vmatmul.mubr.f32.gmra.mxu0 %v429
    %v642 = vpop.f32.mrf.mxu0
    %v643 = vadd.f32 %v459, %v642
    %v644 = vpop.f32.mrf.mxu0
    %645 = vmatprep.mubr.f32.mxu0 0.0
    %646 = vmatmul.mubr.f32.gmra.mxu0 %v430
    %v647 = vpop.f32.mrf.mxu0
    %v648 = vadd.f32 %v459, %v647
    %v649 = vpop.f32.mrf.mxu0
    %650 = vmatprep.mubr.f32.mxu0 0.0
    %651 = vmatmul.mubr.f32.gmra.mxu0 %v431
    %v652 = vpop.f32.mrf.mxu0
    %v653 = vadd.f32 %v459, %v652
    %v654 = vpop.f32.mrf.mxu0
    %655 = vmatprep.mubr.f32.mxu0 0.0
    %656 = vmatmul.mubr.f32.gmra.mxu0 %v432
    %v657 = vpop.f32.mrf.mxu0
    %v658 = vadd.f32 %v459, %v657
    %v659 = vpop.f32.mrf.mxu0
    %660 = vmatprep.mubr.f32.mxu0 0.0
    %661 = vmatmul.mubr.f32.gmra.mxu0 %v433
    %v662 = vpop.f32.mrf.mxu0
    %v663 = vadd.f32 %v459, %v662
    %v664 = vpop.f32.mrf.mxu0
    %665 = vmatprep.mubr.f32.mxu0 0.0
    %666 = vmatmul.mubr.f32.gmra.mxu0 %v434
    %v667 = vpop.f32.mrf.mxu0
    %v668 = vadd.f32 %v459, %v667
    %v669 = vpop.f32.mrf.mxu0
    %670 = vmatprep.mubr.f32.mxu0 0.0
    %671 = vmatmul.mubr.f32.gmra.mxu0 %v435
    %v672 = vpop.f32.mrf.mxu0
    %v673 = vadd.f32 %v459, %v672
    %v674 = vpop.f32.mrf.mxu0
    %675 = vmatprep.mubr.f32.mxu0 0.0
    %676 = vmatmul.mubr.f32.gmra.mxu0 %v436
    %v677 = vpop.f32.mrf.mxu0
    %v678 = vadd.f32 %v459, %v677
    %v679 = vpop.f32.mrf.mxu0
    %680 = vmatprep.mubr.f32.mxu0 0.0
    %681 = vmatmul.mubr.f32.gmra.mxu0 %v437
    %v682 = vpop.f32.mrf.mxu0
    %v683 = vadd.f32 %v459, %v682
    %v684 = vpop.f32.mrf.mxu0
    %685 = vdwg.mxu0
    %686 = vst [vmem:[#allocation8] sm:$0xff] %v528
    %687 = vst [vmem:[#allocation8 + $0x8] sm:$0xff] %v533
    %688 = vst [vmem:[#allocation8 + $0x10] sm:$0xff] %v538
    %689 = vst [vmem:[#allocation8 + $0x18] sm:$0xff] %v543
    %690 = vst [vmem:[#allocation8 + $0x20] sm:$0xff] %v548
    %691 = vst [vmem:[#allocation8 + $0x28] sm:$0xff] %v553
    %692 = vst [vmem:[#allocation8 + $0x30] sm:$0xff] %v558
    %693 = vst [vmem:[#allocation8 + $0x38] sm:$0xff] %v563
    %694 = vst [vmem:[#allocation8 + $0x40] sm:$0xff] %v568
    %695 = vst [vmem:[#allocation8 + $0x48] sm:$0xff] %v573
    %696 = vst [vmem:[#allocation8 + $0x50] sm:$0xff] %v578
    %697 = vst [vmem:[#allocation8 + $0x58] sm:$0xff] %v583
    %698 = vst [vmem:[#allocation8 + $0x60] sm:$0xff] %v588
    %699 = vst [vmem:[#allocation8 + $0x68] sm:$0xff] %v593
    %700 = vst [vmem:[#allocation8 + $0x70] sm:$0xff] %v598
    %701 = vst [vmem:[#allocation8 + $0x78] sm:$0xff] %v603
    %702 = vst [vmem:[#allocation8 + $0x80] sm:$0xff] %v608
    %703 = vst [vmem:[#allocation8 + $0x88] sm:$0xff] %v613
    %704 = vst [vmem:[#allocation8 + $0x90] sm:$0xff] %v618
    %705 = vst [vmem:[#allocation8 + $0x98] sm:$0xff] %v623
    %706 = vst [vmem:[#allocation8 + $0xa0] sm:$0xff] %v628
    %707 = vst [vmem:[#allocation8 + $0xa8] sm:$0xff] %v633
    %708 = vst [vmem:[#allocation8 + $0xb0] sm:$0xff] %v638
    %709 = vst [vmem:[#allocation8 + $0xb8] sm:$0xff] %v643
    %710 = vst [vmem:[#allocation8 + $0xc0] sm:$0xff] %v648
    %711 = vst [vmem:[#allocation8 + $0xc8] sm:$0xff] %v653
    %712 = vst [vmem:[#allocation8 + $0xd0] sm:$0xff] %v658
    %713 = vst [vmem:[#allocation8 + $0xd8] sm:$0xff] %v663
    %714 = vst [vmem:[#allocation8 + $0xe0] sm:$0xff] %v668
    %715 = vst [vmem:[#allocation8 + $0xe8] sm:$0xff] %v673
    %716 = vst [vmem:[#allocation8 + $0xf0] sm:$0xff] %v678
    %717 = vst [vmem:[#allocation8 + $0xf8] sm:$0xff] %v683
    // Predicated region
    $region34: #{tpu_custom_call.1} parent=1 // pred_check
      _
    $region35: #{tpu_custom_call.1} parent=1 // pred_check_branch
      %719 = sbr.rel (0) target = $region37
    $region36: #{tpu_custom_call.1} parent=1 // pred_region
      %s721 = ssub.s32 4096, 4096
      %722 = vsyncadd [#allocation4], %s721
      %s723 = sshll.u32 [#allocation8], 4
      %s724 = int_to_ptr.vmem [resolvable:$true] %s723
      %729 = dma.vmem_to_hbm [thread:$0]  %s724, 4096, %s5, [#allocation4], 128, 128, 8
    $region37: #{tpu_custom_call.1} parent=1 // pred_fallthru
      _
    // Predicated region
    $region38: #{tpu_custom_call.1} parent=1 // pred_check
      _
    $region39: #{tpu_custom_call.1} parent=1 // pred_check_branch
      %731 = sbr.rel (0) target = $region41
    $region40: #{tpu_custom_call.1} parent=1 // pred_region
      %732 = dma.done [#allocation4], 4096
    $region41: #{tpu_custom_call.1} parent=1 // pred_fallthru
      _
    %733 = vsyncpa [#allocation3], 1
    %734 = vsyncpa [#allocation6], 1
    %735 = vsyncpa [#allocation4], 1

</llo_original>
